<compile_context>
chip_gen: v7x
topology: tpu7x:2x2x1
jax: 0.10.0
libtpu: 0.0.40
codegen_flags: <defaults>
</compile_context>

<pallas_src>
import functools

import jax
import jax.numpy as jnp
from jax.experimental import pallas as pl
from jax.experimental.pallas import tpu as pltpu

# Logical (PyTorch) sizes and lane-padded (multiple-of-128) output widths.
D_IN, D_H1, D_H2, D_OUT = 14 * 14, 300, 100, 10
P_H1, P_H2, P_OUT = 384, 128, 128


def _round_up(n, m):
    return (n + m - 1) // m * m


def _num_tensorcores():
    """Best-effort TensorCore count per device; never raises (falls back to 1)."""
    try:
        d = jax.devices()[0]
        for attr in ("num_cores", "core_count"):
            v = getattr(d, attr, None)
            if isinstance(v, int) and v > 0:
                return v
        return 1
    except Exception:
        return 1


def mlp_kernel(x_ref, w1_ref, b1_ref, w2_ref, b2_ref, w3_ref, b3_ref, o_ref):
    # In-kernel bf16 cast of the activation tile (no wrapper pad/cast pass).
    x = x_ref[...].astype(jnp.bfloat16)
    # fc1 + ReLU  (bf16 MXU matmul, f32 accumulate, f32 bias/ReLU)
    h1 = jnp.dot(x, w1_ref[...], preferred_element_type=jnp.float32)
    h1 = jnp.maximum(h1 + b1_ref[...], 0.0)
    # fc2 + ReLU
    h2 = jnp.dot(h1.astype(jnp.bfloat16), w2_ref[...],
                 preferred_element_type=jnp.float32)
    h2 = jnp.maximum(h2 + b2_ref[...], 0.0)
    # fc3 (no activation); bf16 writeback on a lane-dense 128-wide block.
    o = jnp.dot(h2.astype(jnp.bfloat16), w3_ref[...],
                preferred_element_type=jnp.float32)
    o_ref[...] = (o + b3_ref[...]).astype(o_ref.dtype)


def init_params(key):
    """f32 params matching nn.Linear defaults; weights stored as (in, out)."""
    dims = [(D_IN, D_H1), (D_H1, D_H2), (D_H2, D_OUT)]
    params = {}
    for idx, (fan_in, fan_out) in enumerate(dims, start=1):
        key, kw, kb = jax.random.split(key, 3)
        bound = 1.0 / jnp.sqrt(fan_in)
        params[f"w{idx}"] = jax.random.uniform(
            kw, (fan_in, fan_out), jnp.float32, -bound, bound)
        params[f"b{idx}"] = jax.random.uniform(
            kb, (1, fan_out), jnp.float32, -bound, bound)
    return params


def prepare_kernel_params(params):
    """One-time prep: zero-pad lane dims, cast weights to bf16 (f32 biases)."""
    def pad2(a, rows, cols, dtype):
        r, c = a.shape
        return jnp.pad(a, ((0, rows - r), (0, cols - c))).astype(dtype)
    return {
        "w1": pad2(params["w1"], D_IN, P_H1, jnp.bfloat16),   # (196, 384)
        "b1": pad2(params["b1"], 1, P_H1, jnp.float32),
        "w2": pad2(params["w2"], P_H1, P_H2, jnp.bfloat16),   # (384, 128)
        "b2": pad2(params["b2"], 1, P_H2, jnp.float32),
        "w3": pad2(params["w3"], P_H2, P_OUT, jnp.bfloat16),  # (128, 128)
        "b3": pad2(params["b3"], 1, P_OUT, jnp.float32),
    }


@functools.partial(jax.jit, static_argnames=("tm",))
def net_forward(x, kparams, tm=2048):
    """x: (B, 196) f32.  kparams: padded/bf16 params from prepare_kernel_params."""
    B = x.shape[0]
    nc = _num_tensorcores()

    # Tile selection: multiple of 16 (bf16 sublane tile); single step for
    # small batches on single-TC chips, >=nc steps when multiple TCs exist.
    bp_min = _round_up(B, 16)
    tm = max(16, _round_up(min(tm, bp_min), 16))
    if nc > 1:
        tm = max(16, min(tm, _round_up((bp_min + nc - 1) // nc, 16)))
    bp = _round_up(B, tm)                 # padded batch, multiple of tm
    grid = bp // tm

    # Only a (cheap) batch pad when needed; no feature pad, no dtype cast here.
    x_p = jnp.pad(x, ((0, bp - B), (0, 0))) if bp > B else x

    # Self-consistent (padded) cost estimate.
    flops = 2 * bp * (D_IN * P_H1 + P_H1 * P_H2 + P_H2 * P_OUT)
    bytes_accessed = (
        bp * D_IN * 4                                        # f32 activations in
        + (D_IN * P_H1 + P_H1 * P_H2 + P_H2 * P_OUT) * 2     # bf16 weights
        + (P_H1 + P_H2 + P_OUT) * 4                          # f32 biases
        + bp * P_OUT * 2                                     # bf16 output
    )

    out = pl.pallas_call(
        mlp_kernel,
        out_shape=jax.ShapeDtypeStruct((bp, P_OUT), jnp.bfloat16),
        grid=(grid,),
        in_specs=[
            pl.BlockSpec((tm, D_IN), lambda i: (i, 0)),      # x tile (pipelined)
            pl.BlockSpec((D_IN, P_H1), lambda i: (0, 0)),    # w1 (VMEM-resident)
            pl.BlockSpec((1, P_H1), lambda i: (0, 0)),       # b1
            pl.BlockSpec((P_H1, P_H2), lambda i: (0, 0)),    # w2
            pl.BlockSpec((1, P_H2), lambda i: (0, 0)),       # b2
            pl.BlockSpec((P_H2, P_OUT), lambda i: (0, 0)),   # w3
            pl.BlockSpec((1, P_OUT), lambda i: (0, 0)),      # b3
        ],
        out_specs=pl.BlockSpec((tm, P_OUT), lambda i: (i, 0)),
        compiler_params=pltpu.CompilerParams(
            dimension_semantics=("parallel",),               # megacore on v7x
            vmem_limit_bytes=48 * 1024 * 1024,               # v7x-safe (<64 MiB)
        ),
        cost_estimate=pl.CostEstimate(
            flops=flops, transcendentals=0, bytes_accessed=bytes_accessed),
    )(x_p, kparams["w1"], kparams["b1"], kparams["w2"], kparams["b2"],
      kparams["w3"], kparams["b3"])

    return out[:B, :D_OUT].astype(jnp.float32)


def net_forward_ref(x, params):
    h1 = jnp.maximum(x @ params["w1"] + params["b1"], 0.0)
    h2 = jnp.maximum(h1 @ params["w2"] + params["b2"], 0.0)
    return h2 @ params["w3"] + params["b3"]


if __name__ == "__main__":
    key = jax.random.PRNGKey(0)
    kx, kp = jax.random.split(key)

    # Small batch, not a multiple of 16, so the run exercises batch padding,
    # tile clamping and the output slice/cast path.
    B = 50
    x = jax.random.normal(kx, (B, D_IN), dtype=jnp.float32)

    params = init_params(kp)
    kparams = prepare_kernel_params(params)   # one-time pad + bf16 cast

    out = net_forward(x, kparams)             # tm auto-clamped for small batch
    out = jax.block_until_ready(out)

    ref = net_forward_ref(x, params)
    assert out.shape == (B, D_OUT)
    # bf16 matmul inputs + bf16 output with f32 accumulation -> loose tolerance.
    assert jnp.allclose(out, ref, atol=3e-2, rtol=2e-2), float(
        jnp.max(jnp.abs(out - ref)))

    print("KERNEL_OK")
</pallas_src>

<mosaic_0001>
module attributes {stable_mosaic.version = 11 : i64} {
  func.func @mlp_kernel(%arg0: i32, %arg1: memref<64x196xf32, #tpu.memory_space<vmem>>, %arg2: memref<196x384xbf16, #tpu.memory_space<vmem>>, %arg3: memref<1x384xf32, #tpu.memory_space<vmem>>, %arg4: memref<384x128xbf16, #tpu.memory_space<vmem>>, %arg5: memref<1x128xf32, #tpu.memory_space<vmem>>, %arg6: memref<128x128xbf16, #tpu.memory_space<vmem>>, %arg7: memref<1x128xf32, #tpu.memory_space<vmem>>, %arg8: memref<64x128xbf16, #tpu.memory_space<vmem>>) attributes {dimension_semantics = [#tpu.dimension_semantics<parallel>], iteration_bounds = array<i64: 1>, scalar_prefetch = 0 : i64, scratch_operands = 0 : i64, tpu.core_type = #tpu.core_type<tc>, window_params = [{transform_indices = @transform_0, window_bounds = array<i64: 64, 196>}, {pipeline_mode = #tpu.pipeline_mode<synchronous>, transform_indices = @transform_1, window_bounds = array<i64: 196, 384>}, {pipeline_mode = #tpu.pipeline_mode<synchronous>, transform_indices = @transform_2, window_bounds = array<i64: 1, 384>}, {pipeline_mode = #tpu.pipeline_mode<synchronous>, transform_indices = @transform_3, window_bounds = array<i64: 384, 128>}, {pipeline_mode = #tpu.pipeline_mode<synchronous>, transform_indices = @transform_4, window_bounds = array<i64: 1, 128>}, {pipeline_mode = #tpu.pipeline_mode<synchronous>, transform_indices = @transform_5, window_bounds = array<i64: 128, 128>}, {pipeline_mode = #tpu.pipeline_mode<synchronous>, transform_indices = @transform_6, window_bounds = array<i64: 1, 128>}, {transform_indices = @transform_7, window_bounds = array<i64: 64, 128>}]} {
    %c0 = arith.constant 0 : index
    %c0_0 = arith.constant 0 : index
    %0 = vector.load %arg1[%c0, %c0_0] : memref<64x196xf32, #tpu.memory_space<vmem>>, vector<64x196xf32>
    %1 = arith.truncf %0 : vector<64x196xf32> to vector<64x196xbf16>
    %c0_1 = arith.constant 0 : index
    %c0_2 = arith.constant 0 : index
    %2 = vector.load %arg2[%c0_1, %c0_2] : memref<196x384xbf16, #tpu.memory_space<vmem>>, vector<196x384xbf16>
    %cst = arith.constant dense<0.000000e+00> : vector<64x384xf32>
    %3 = tpu.matmul %1, %2, %cst {dimension_numbers = #tpu.dot_dimension_numbers<[1], [0], [0], [1], [0, 0, 1, 1], [], []>} : vector<64x196xbf16>, vector<196x384xbf16>, vector<64x384xf32> -> vector<64x384xf32>
    %c0_3 = arith.constant 0 : index
    %c0_4 = arith.constant 0 : index
    %4 = vector.load %arg3[%c0_3, %c0_4] : memref<1x384xf32, #tpu.memory_space<vmem>>, vector<1x384xf32>
    %5 = vector.broadcast %4 : vector<1x384xf32> to vector<64x384xf32>
    %6 = arith.addf %3, %5 : vector<64x384xf32>
    %cst_5 = arith.constant 0.000000e+00 : f32
    %7 = vector.broadcast %cst_5 : f32 to vector<64x384xf32>
    %8 = arith.maximumf %6, %7 : vector<64x384xf32>
    %9 = arith.truncf %8 : vector<64x384xf32> to vector<64x384xbf16>
    %c0_6 = arith.constant 0 : index
    %c0_7 = arith.constant 0 : index
    %10 = vector.load %arg4[%c0_6, %c0_7] : memref<384x128xbf16, #tpu.memory_space<vmem>>, vector<384x128xbf16>
    %cst_8 = arith.constant dense<0.000000e+00> : vector<64x128xf32>
    %11 = tpu.matmul %9, %10, %cst_8 {dimension_numbers = #tpu.dot_dimension_numbers<[1], [0], [0], [1], [0, 0, 1, 1], [], []>} : vector<64x384xbf16>, vector<384x128xbf16>, vector<64x128xf32> -> vector<64x128xf32>
    %c0_9 = arith.constant 0 : index
    %c0_10 = arith.constant 0 : index
    %12 = vector.load %arg5[%c0_9, %c0_10] : memref<1x128xf32, #tpu.memory_space<vmem>>, vector<1x128xf32>
    %13 = vector.broadcast %12 : vector<1x128xf32> to vector<64x128xf32>
    %14 = arith.addf %11, %13 : vector<64x128xf32>
    %cst_11 = arith.constant 0.000000e+00 : f32
    %15 = vector.broadcast %cst_11 : f32 to vector<64x128xf32>
    %16 = arith.maximumf %14, %15 : vector<64x128xf32>
    %17 = arith.truncf %16 : vector<64x128xf32> to vector<64x128xbf16>
    %c0_12 = arith.constant 0 : index
    %c0_13 = arith.constant 0 : index
    %18 = vector.load %arg6[%c0_12, %c0_13] : memref<128x128xbf16, #tpu.memory_space<vmem>>, vector<128x128xbf16>
    %cst_14 = arith.constant dense<0.000000e+00> : vector<64x128xf32>
    %19 = tpu.matmul %17, %18, %cst_14 {dimension_numbers = #tpu.dot_dimension_numbers<[1], [0], [0], [1], [0, 0, 1, 1], [], []>} : vector<64x128xbf16>, vector<128x128xbf16>, vector<64x128xf32> -> vector<64x128xf32>
    %c0_15 = arith.constant 0 : index
    %c0_16 = arith.constant 0 : index
    %20 = vector.load %arg7[%c0_15, %c0_16] : memref<1x128xf32, #tpu.memory_space<vmem>>, vector<1x128xf32>
    %21 = vector.broadcast %20 : vector<1x128xf32> to vector<64x128xf32>
    %22 = arith.addf %19, %21 : vector<64x128xf32>
    %23 = arith.truncf %22 : vector<64x128xf32> to vector<64x128xbf16>
    %c0_17 = arith.constant 0 : index
    %c0_18 = arith.constant 0 : index
    %24 = vector.load %arg8[%c0_17, %c0_18] : memref<64x128xbf16, #tpu.memory_space<vmem>>, vector<64x128xbf16>
    tpu.vector_store %arg8[%c0_17, %c0_18], %23 {strides = array<i32>} : memref<64x128xbf16, #tpu.memory_space<vmem>>, vector<64x128xbf16>,
    return
  }
  func.func @transform_0(%arg0: i32) -> (i32, i32) {
    %c0_i32 = arith.constant 0 : i32
    %c0_i32_0 = arith.constant 0 : i32
    return %arg0, %c0_i32 : i32, i32
  }
  func.func @transform_1(%arg0: i32) -> (i32, i32) {
    %c0_i32 = arith.constant 0 : i32
    %c0_i32_0 = arith.constant 0 : i32
    %c0_i32_1 = arith.constant 0 : i32
    return %c0_i32, %c0_i32_0 : i32, i32
  }
  func.func @transform_2(%arg0: i32) -> (i32, i32) {
    %c0_i32 = arith.constant 0 : i32
    %c0_i32_0 = arith.constant 0 : i32
    %c0_i32_1 = arith.constant 0 : i32
    return %c0_i32, %c0_i32_0 : i32, i32
  }
  func.func @transform_3(%arg0: i32) -> (i32, i32) {
    %c0_i32 = arith.constant 0 : i32
    %c0_i32_0 = arith.constant 0 : i32
    %c0_i32_1 = arith.constant 0 : i32
    return %c0_i32, %c0_i32_0 : i32, i32
  }
  func.func @transform_4(%arg0: i32) -> (i32, i32) {
    %c0_i32 = arith.constant 0 : i32
    %c0_i32_0 = arith.constant 0 : i32
    %c0_i32_1 = arith.constant 0 : i32
    return %c0_i32, %c0_i32_0 : i32, i32
  }
  func.func @transform_5(%arg0: i32) -> (i32, i32) {
    %c0_i32 = arith.constant 0 : i32
    %c0_i32_0 = arith.constant 0 : i32
    %c0_i32_1 = arith.constant 0 : i32
    return %c0_i32, %c0_i32_0 : i32, i32
  }
  func.func @transform_6(%arg0: i32) -> (i32, i32) {
    %c0_i32 = arith.constant 0 : i32
    %c0_i32_0 = arith.constant 0 : i32
    %c0_i32_1 = arith.constant 0 : i32
    return %c0_i32, %c0_i32_0 : i32, i32
  }
  func.func @transform_7(%arg0: i32) -> (i32, i32) {
    %c0_i32 = arith.constant 0 : i32
    %c0_i32_0 = arith.constant 0 : i32
    return %arg0, %c0_i32 : i32, i32
  }
}

</mosaic_0001>

<llo_original>
// kernel: net_forward.1
$region0: #{net_forward.1}
  #allocation0 [shape = 'u32[]', space=smem, size = 0x4, offset = 0x4, fixed_abs, tag = 'smem constant byte address 0x4 - core index']
  #allocation1 [shape = 'u32[144,128]{1,0:T(1,128)}', space=vmem, size = 0x12000, scoped, tag = 'internal scratch']
  %s0 = inlined_call_operand.vmem [shape: f32[64,196], index: 0, kind: input, shape index: {}]
  %s1 = inlined_call_operand.hbm [shape: bf16[196,384], index: 1, kind: input, shape index: {}]
  %s2 = inlined_call_operand.vmem [shape: f32[1,384], index: 2, kind: input, shape index: {}]
  %s3 = inlined_call_operand.vmem [shape: bf16[384,128], index: 3, kind: input, shape index: {}]
  %s4 = inlined_call_operand.hbm [shape: f32[1,128], index: 4, kind: input, shape index: {}]
  %s5 = inlined_call_operand.vmem [shape: bf16[128,128], index: 5, kind: input, shape index: {}]
  %s6 = inlined_call_operand.hbm [shape: f32[1,128], index: 6, kind: input, shape index: {}]
  %s7 = inlined_call_operand.vmem [shape: bf16[64,128], index: 7, kind: output, shape index: {}]
  %s8 = sld [smem:[#allocation0]]
  $region50: #{net_forward.1} parent=0
    _
  %s10 = ssub.s32 1, %s8
  %s11 = scalar_select 0, %s10, %s8
  $region1: #{net_forward.1} parent=0
    #allocation2 [shape = 'u8[153600]{0}', space=vmem, size = 0x25800, scoped, tag = 'input window, operand 1, single buffered']
    #allocation3 [shape = 's32[1]{0}', space=sflag, size = 0x4, scoped, tag = 'scoped memory for net_forward.1']
    #allocation4 [shape = 'u8[512]{0}', space=vmem, size = 0x400, scoped, tag = 'input window, operand 4, single buffered']
    #allocation5 [shape = 's32[1]{0}', space=sflag, size = 0x4, scoped, tag = 'scoped memory for net_forward.1']
    #allocation6 [shape = 'u8[512]{0}', space=vmem, size = 0x400, scoped, tag = 'input window, operand 6, single buffered']
    %12 = vsyncpa [#allocation3], 0
    %13 = vsyncpa [#allocation5], 0
    // Predicated region
    $region2: #{net_forward.1} parent=1 // pred_check
      _
    $region3: #{net_forward.1} parent=1 // pred_check_branch
      %15 = sbr.rel (0) target = $region5
    $region4: #{net_forward.1} parent=1 // pred_region
      _
    $region5: #{net_forward.1} parent=1 // pred_fallthru
      _
    // Predicated region
    $region6: #{net_forward.1} parent=1 // pred_check
      _
    $region7: #{net_forward.1} parent=1 // pred_check_branch
      %17 = sbr.rel (0) target = $region9
    $region8: #{net_forward.1} parent=1 // pred_region
      %s19 = ssub.s32 4800, 4800
      %20 = vsyncadd [#allocation3], %s19
      %s21 = sshll.u32 [#allocation2], 4
      %s22 = int_to_ptr.vmem [resolvable:$true] %s21
      %27 = dma.hbm_to_vmem [thread:$0]  %s1, 4800, %s22, [#allocation3], 192, 192, 12
    $region9: #{net_forward.1} parent=1 // pred_fallthru
      _
    // Predicated region
    $region10: #{net_forward.1} parent=1 // pred_check
      _
    $region11: #{net_forward.1} parent=1 // pred_check_branch
      %29 = sbr.rel (0) target = $region13
    $region12: #{net_forward.1} parent=1 // pred_region
      _
    $region13: #{net_forward.1} parent=1 // pred_fallthru
      _
    // Predicated region
    $region14: #{net_forward.1} parent=1 // pred_check
      _
    $region15: #{net_forward.1} parent=1 // pred_check_branch
      %31 = sbr.rel (0) target = $region17
    $region16: #{net_forward.1} parent=1 // pred_region
      _
    $region17: #{net_forward.1} parent=1 // pred_fallthru
      _
    // Predicated region
    $region18: #{net_forward.1} parent=1 // pred_check
      _
    $region19: #{net_forward.1} parent=1 // pred_check_branch
      %33 = sbr.rel (0) target = $region21
    $region20: #{net_forward.1} parent=1 // pred_region
      %s35 = ssub.s32 16, 16
      %36 = vsyncadd [#allocation5], %s35
      %s38 = sshll.u32 [#allocation4], 4
      %s39 = int_to_ptr.vmem [resolvable:$true] %s38
      %41 = dma.hbm_to_vmem [thread:$0]  %s4, 16, %s39, [#allocation5]
    $region21: #{net_forward.1} parent=1 // pred_fallthru
      _
    // Predicated region
    $region22: #{net_forward.1} parent=1 // pred_check
      _
    $region23: #{net_forward.1} parent=1 // pred_check_branch
      %43 = sbr.rel (0) target = $region25
    $region24: #{net_forward.1} parent=1 // pred_region
      _
    $region25: #{net_forward.1} parent=1 // pred_fallthru
      _
    // Predicated region
    $region26: #{net_forward.1} parent=1 // pred_check
      _
    $region27: #{net_forward.1} parent=1 // pred_check_branch
      %45 = sbr.rel (0) target = $region29
    $region28: #{net_forward.1} parent=1 // pred_region
      %s47 = ssub.s32 16, 16
      %48 = vsyncadd [#allocation5], %s47
      %s50 = sshll.u32 [#allocation6], 4
      %s51 = int_to_ptr.vmem [resolvable:$true] %s50
      %53 = dma.hbm_to_vmem [thread:$0]  %s6, 16, %s51, [#allocation5]
    $region29: #{net_forward.1} parent=1 // pred_fallthru
      _
    // Predicated region
    $region30: #{net_forward.1} parent=1 // pred_check
      _
    $region31: #{net_forward.1} parent=1 // pred_check_branch
      %55 = sbr.rel (0) target = $region33
    $region32: #{net_forward.1} parent=1 // pred_region
      %56 = dma.done [#allocation3], 4800
    $region33: #{net_forward.1} parent=1 // pred_fallthru
      _
    // Predicated region
    $region34: #{net_forward.1} parent=1 // pred_check
      _
    $region35: #{net_forward.1} parent=1 // pred_check_branch
      %58 = sbr.rel (0) target = $region37
    $region36: #{net_forward.1} parent=1 // pred_region
      %59 = dma.done [#allocation5], 16
    $region37: #{net_forward.1} parent=1 // pred_fallthru
      _
    // Predicated region
    $region38: #{net_forward.1} parent=1 // pred_check
      _
    $region39: #{net_forward.1} parent=1 // pred_check_branch
      %61 = sbr.rel (0) target = $region41
    $region40: #{net_forward.1} parent=1 // pred_region
      %62 = dma.done [#allocation5], 16
    $region41: #{net_forward.1} parent=1 // pred_fallthru
      _
    %v64 = vld [vmem:[%s0] sm:$0xff]
    %v65 = vld [vmem:[%s0 + $0x8] sm:$0xff]
    %v66 = vld [vmem:[%s0 + $0x10] sm:$0xff]
    %v67 = vld [vmem:[%s0 + $0x18] sm:$0xff]
    %v68 = vld [vmem:[%s0 + $0x20] sm:$0xff]
    %v69 = vld [vmem:[%s0 + $0x28] sm:$0xff]
    %v70 = vld [vmem:[%s0 + $0x30] sm:$0xff]
    %v71 = vld [vmem:[%s0 + $0x38] sm:$0xff]
    %v72 = vld [vmem:[%s0 + $0x40] sm:$0xff]
    %v73 = vld [vmem:[%s0 + $0x48] sm:$0xff]
    %v74 = vld [vmem:[%s0 + $0x50] sm:$0xff]
    %v75 = vld [vmem:[%s0 + $0x58] sm:$0xff]
    %v76 = vld [vmem:[%s0 + $0x60] sm:$0xff]
    %v77 = vld [vmem:[%s0 + $0x68] sm:$0xff]
    %v78 = vld [vmem:[%s0 + $0x70] sm:$0xff]
    %v79 = vld [vmem:[%s0 + $0x78] sm:$0xff]
    %v80 = vpack.c.bf16 %v66, %v64
    %v81 = vpack.c.bf16 %v67, %v65
    %v82 = vpack.c.bf16 %v70, %v68
    %v83 = vpack.c.bf16 %v71, %v69
    %v84 = vpack.c.bf16 %v74, %v72
    %v85 = vpack.c.bf16 %v75, %v73
    %v86 = vpack.c.bf16 %v78, %v76
    %v87 = vpack.c.bf16 %v79, %v77
    %v88 = vld [vmem:[#allocation2] sm:$0xff]
    %v89 = vld [vmem:[#allocation2 + $0x8] sm:$0xf]
    %v90 = vld [vmem:[#allocation2 + $0xc] sm:$0xff]
    %v91 = vld [vmem:[#allocation2 + $0x14] sm:$0xf]
    %v92 = vld [vmem:[#allocation2 + $0x18] sm:$0xff]
    %v93 = vld [vmem:[#allocation2 + $0x20] sm:$0xf]
    %v94 = vld [vmem:[#allocation2 + $0x24] sm:$0xff]
    %v95 = vld [vmem:[#allocation2 + $0x2c] sm:$0xf]
    %v96 = vld [vmem:[#allocation2 + $0x30] sm:$0xff]
    %v97 = vld [vmem:[#allocation2 + $0x38] sm:$0xf]
    %v98 = vld [vmem:[#allocation2 + $0x3c] sm:$0xff]
    %v99 = vld [vmem:[#allocation2 + $0x44] sm:$0xf]
    %v100 = vld [vmem:[#allocation2 + $0x48] sm:$0xff]
    %v101 = vld [vmem:[#allocation2 + $0x50] sm:$0xf]
    %v102 = vld [vmem:[#allocation2 + $0x54] sm:$0xff]
    %v103 = vld [vmem:[#allocation2 + $0x5c] sm:$0xf]
    %v104 = vld [vmem:[#allocation2 + $0x60] sm:$0xff]
    %v105 = vld [vmem:[#allocation2 + $0x68] sm:$0xf]
    %v106 = vld [vmem:[#allocation2 + $0x6c] sm:$0xff]
    %v107 = vld [vmem:[#allocation2 + $0x74] sm:$0xf]
    %v108 = vld [vmem:[#allocation2 + $0x78] sm:$0xff]
    %v109 = vld [vmem:[#allocation2 + $0x80] sm:$0xf]
    %v110 = vld [vmem:[#allocation2 + $0x84] sm:$0xff]
    %v111 = vld [vmem:[#allocation2 + $0x8c] sm:$0xf]
    %v112 = vld [vmem:[#allocation2 + $0x90] sm:$0xff]
    %v113 = vld [vmem:[#allocation2 + $0x98] sm:$0xf]
    %v114 = vld [vmem:[#allocation2 + $0x9c] sm:$0xff]
    %v115 = vld [vmem:[#allocation2 + $0xa4] sm:$0xf]
    %v116 = vld [vmem:[#allocation2 + $0xa8] sm:$0xff]
    %v117 = vld [vmem:[#allocation2 + $0xb0] sm:$0xf]
    %v118 = vld [vmem:[#allocation2 + $0xb4] sm:$0xff]
    %v119 = vld [vmem:[#allocation2 + $0xbc] sm:$0xf]
    %v120 = vld [vmem:[#allocation2 + $0xc0] sm:$0xff]
    %v121 = vld [vmem:[#allocation2 + $0xc8] sm:$0xf]
    %v122 = vld [vmem:[#allocation2 + $0xcc] sm:$0xff]
    %v123 = vld [vmem:[#allocation2 + $0xd4] sm:$0xf]
    %v124 = vld [vmem:[#allocation2 + $0xd8] sm:$0xff]
    %v125 = vld [vmem:[#allocation2 + $0xe0] sm:$0xf]
    %v126 = vld [vmem:[#allocation2 + $0xe4] sm:$0xff]
    %v127 = vld [vmem:[#allocation2 + $0xec] sm:$0xf]
    %v128 = vld [vmem:[#allocation2 + $0xf0] sm:$0xff]
    %v129 = vld [vmem:[#allocation2 + $0xf8] sm:$0xf]
    %v130 = vld [vmem:[#allocation2 + $0xfc] sm:$0xff]
    %v131 = vld [vmem:[#allocation2 + $0x104] sm:$0xf]
    %v132 = vld [vmem:[#allocation2 + $0x108] sm:$0xff]
    %v133 = vld [vmem:[#allocation2 + $0x110] sm:$0xf]
    %v134 = vld [vmem:[#allocation2 + $0x114] sm:$0xff]
    %v135 = vld [vmem:[#allocation2 + $0x11c] sm:$0xf]
    %v136 = vld [vmem:[#allocation2 + $0x120] sm:$0x33]
    %v137 = vld [vmem:[#allocation2 + $0x128] sm:$0x3]
    %v138 = vld [vmem:[%s2] sm:$0x7]
    %v140 = vlaneseq
    %v141 = vshrl.u32 %v140, 7
    %v142 = vsub.s32 0, %v141
    %v143 = vrot.slane %v138, %v142
    %v144 = vlaneseq
    %v145 = vshrl.u32 %v144, 7
    %v146 = vsub.s32 1, %v145
    %v147 = vrot.slane %v138, %v146
    %v148 = vlaneseq
    %v149 = vshrl.u32 %v148, 7
    %v150 = vsub.s32 2, %v149
    %v151 = vrot.slane %v138, %v150
    %v205 = vunpack.c.l.b16 %v88
    %v206 = vunpack.c.h.b16 %v88
    %v207 = vunpack.c.l.b16 %v89
    %v208 = vunpack.c.l.b16 %v90
    %v209 = vunpack.c.h.b16 %v90
    %v210 = vunpack.c.l.b16 %v91
    %v211 = vunpack.c.l.b16 %v92
    %v212 = vunpack.c.h.b16 %v92
    %v213 = vunpack.c.l.b16 %v93
    %v214 = vunpack.c.l.b16 %v94
    %v215 = vunpack.c.h.b16 %v94
    %v216 = vunpack.c.l.b16 %v95
    %v217 = vunpack.c.l.b16 %v96
    %v218 = vunpack.c.h.b16 %v96
    %v219 = vunpack.c.l.b16 %v97
    %v220 = vunpack.c.l.b16 %v98
    %v221 = vunpack.c.h.b16 %v98
    %v222 = vunpack.c.l.b16 %v99
    %v223 = vunpack.c.l.b16 %v100
    %v224 = vunpack.c.h.b16 %v100
    %v225 = vunpack.c.l.b16 %v101
    %v226 = vunpack.c.l.b16 %v102
    %v227 = vunpack.c.h.b16 %v102
    %v228 = vunpack.c.l.b16 %v103
    %v229 = vunpack.c.l.b16 %v104
    %v230 = vunpack.c.h.b16 %v104
    %v231 = vunpack.c.l.b16 %v105
    %v232 = vunpack.c.l.b16 %v106
    %v233 = vunpack.c.h.b16 %v106
    %v234 = vunpack.c.l.b16 %v107
    %v235 = vunpack.c.l.b16 %v108
    %v236 = vunpack.c.h.b16 %v108
    %v237 = vunpack.c.l.b16 %v109
    %v238 = vunpack.c.l.b16 %v110
    %v239 = vunpack.c.h.b16 %v110
    %v240 = vunpack.c.l.b16 %v111
    %v241 = vunpack.c.l.b16 %v112
    %v242 = vunpack.c.h.b16 %v112
    %v243 = vunpack.c.l.b16 %v113
    %v244 = vunpack.c.l.b16 %v114
    %v245 = vunpack.c.h.b16 %v114
    %v246 = vunpack.c.l.b16 %v115
    %v247 = vunpack.c.l.b16 %v116
    %v248 = vunpack.c.h.b16 %v116
    %v249 = vunpack.c.l.b16 %v117
    %v250 = vunpack.c.l.b16 %v118
    %v251 = vunpack.c.h.b16 %v118
    %v252 = vunpack.c.l.b16 %v119
    %v253 = vunpack.c.l.b16 %v120
    %v254 = vunpack.c.h.b16 %v120
    %v255 = vunpack.c.l.b16 %v121
    %v256 = vunpack.c.l.b16 %v122
    %v257 = vunpack.c.h.b16 %v122
    %v258 = vunpack.c.l.b16 %v123
    %v259 = vunpack.c.l.b16 %v124
    %v260 = vunpack.c.h.b16 %v124
    %v261 = vunpack.c.l.b16 %v125
    %v262 = vunpack.c.l.b16 %v126
    %v263 = vunpack.c.h.b16 %v126
    %v264 = vunpack.c.l.b16 %v127
    %v265 = vunpack.c.l.b16 %v128
    %v266 = vunpack.c.h.b16 %v128
    %v267 = vunpack.c.l.b16 %v129
    %v268 = vunpack.c.l.b16 %v130
    %v269 = vunpack.c.h.b16 %v130
    %v270 = vunpack.c.l.b16 %v131
    %v271 = vunpack.c.l.b16 %v132
    %v272 = vunpack.c.h.b16 %v132
    %v273 = vunpack.c.l.b16 %v133
    %v274 = vunpack.c.l.b16 %v134
    %v275 = vunpack.c.h.b16 %v134
    %v276 = vunpack.c.l.b16 %v135
    %v277 = vunpack.c.l.b16 %v136
    %v278 = vunpack.c.h.b16 %v136
    %v279 = vunpack.c.l.b16 %v137
    %v280 = vpack.c.b16 %v208, %v205
    %v281 = vpack.c.b16 %v209, %v206
    %v282 = vpack.c.b16 %v210, %v207
    %v283 = vpack.c.b16 %v214, %v211
    %v284 = vpack.c.b16 %v215, %v212
    %v285 = vpack.c.b16 %v216, %v213
    %v286 = vpack.c.b16 %v220, %v217
    %v287 = vpack.c.b16 %v221, %v218
    %v288 = vpack.c.b16 %v222, %v219
    %v289 = vpack.c.b16 %v226, %v223
    %v290 = vpack.c.b16 %v227, %v224
    %v291 = vpack.c.b16 %v228, %v225
    %v292 = vpack.c.b16 %v232, %v229
    %v293 = vpack.c.b16 %v233, %v230
    %v294 = vpack.c.b16 %v234, %v231
    %v295 = vpack.c.b16 %v238, %v235
    %v296 = vpack.c.b16 %v239, %v236
    %v297 = vpack.c.b16 %v240, %v237
    %v298 = vpack.c.b16 %v244, %v241
    %v299 = vpack.c.b16 %v245, %v242
    %v300 = vpack.c.b16 %v246, %v243
    %v301 = vpack.c.b16 %v250, %v247
    %v302 = vpack.c.b16 %v251, %v248
    %v303 = vpack.c.b16 %v252, %v249
    %v304 = vpack.c.b16 %v256, %v253
    %v305 = vpack.c.b16 %v257, %v254
    %v306 = vpack.c.b16 %v258, %v255
    %v307 = vpack.c.b16 %v262, %v259
    %v308 = vpack.c.b16 %v263, %v260
    %v309 = vpack.c.b16 %v264, %v261
    %v310 = vpack.c.b16 %v268, %v265
    %v311 = vpack.c.b16 %v269, %v266
    %v312 = vpack.c.b16 %v270, %v267
    %v313 = vpack.c.b16 %v274, %v271
    %v314 = vpack.c.b16 %v275, %v272
    %v315 = vpack.c.b16 %v276, %v273
    %v316 = vpack.c.b16 %v277, %v277
    %v317 = vpack.c.b16 %v278, %v278
    %v318 = vpack.c.b16 %v279, %v279
    %vm355 = vcmask 556032
    %v357 = vsel %vm355, %v81, 0
    %v360 = vsel %vm355, %v83, 0
    %v363 = vsel %vm355, %v85, 0
    %v366 = vsel %vm355, %v87, 0
    %vm368 = vcmask 1041408
    %v370 = vsel %vm368, %v316, 0
    %v373 = vsel %vm368, %v317, 0
    %v376 = vsel %vm368, %v318, 0
    %378 = vmatprep.subr.bf16.mxu0 %v281
    %379 = vmatpush1.bf16.msra.mxu0 %v280
    %380 = vmatprep.subr.bf16.mxu0 %v284
    %381 = vmatpush1.bf16.msra.mxu0 %v283
    %382 = vmatprep.subr.bf16.mxu0 %v287
    %383 = vmatpush1.bf16.msra.mxu0 %v286
    %384 = vmatprep.subr.bf16.mxu0 %v290
    %385 = vmatpush1.bf16.msra.mxu0 %v289
    %386 = vmatprep.subr.bf16.mxu0 %v293
    %387 = vmatpush1.bf16.msra.mxu0 %v292
    %388 = vmatprep.subr.bf16.mxu0 %v296
    %389 = vmatpush1.bf16.msra.mxu0 %v295
    %390 = vmatprep.subr.bf16.mxu0 %v299
    %391 = vmatpush1.bf16.msra.mxu0 %v298
    %392 = vmatprep.subr.bf16.mxu0 %v302
    %393 = vmatpush1.bf16.msra.mxu0 %v301
    %394 = vmatprep.subr.bf16.mxu0 %v305
    %395 = vmatpush1.bf16.msra.mxu0 %v304
    %396 = vmatprep.subr.bf16.mxu0 %v308
    %397 = vmatpush1.bf16.msra.mxu0 %v307
    %398 = vmatprep.subr.bf16.mxu0 %v311
    %399 = vmatpush1.bf16.msra.mxu0 %v310
    %400 = vmatprep.subr.bf16.mxu0 %v314
    %401 = vmatpush1.bf16.msra.mxu0 %v313
    %402 = vmatprep.subr.bf16.mxu0 %v373
    %403 = vmatpush1.bf16.msra.mxu0 %v370
    %404 = vmatprep.subr.bf16.mxu0 0
    %405 = vmatpush1.bf16.msra.mxu0 0
    %406 = vmatprep.subr.bf16.mxu0 0
    %407 = vmatpush1.bf16.msra.mxu0 0
    %408 = vmatprep.subr.bf16.mxu0 0
    %409 = vmatpush1.bf16.msra.mxu0 0
    %410 = vmatprep.mubr.bf16.mxu0 %v357
    %411 = vmatmul.mubr.bf16.gmra.mrb[0].mxu0 %v80
    %v412 = vpop.f32.mrb[0].mxu0
    %v413 = vadd.f32 %v143, %v412
    %v414 = vpop.f32.mrb[0].mxu0
    %v415 = vadd.f32 %v147, %v414
    %v416 = vpop.f32.mrb[0].mxu0
    %v417 = vadd.f32 %v143, %v416
    %v418 = vpop.f32.mrb[0].mxu0
    %v419 = vadd.f32 %v147, %v418
    %420 = vmatprep.mubr.bf16.mxu0 %v360
    %421 = vmatmul.mubr.bf16.gmra.mrb[0].mxu0 %v82
    %v422 = vpop.f32.mrb[0].mxu0
    %v423 = vadd.f32 %v143, %v422
    %v424 = vpop.f32.mrb[0].mxu0
    %v425 = vadd.f32 %v147, %v424
    %v426 = vpop.f32.mrb[0].mxu0
    %v427 = vadd.f32 %v143, %v426
    %v428 = vpop.f32.mrb[0].mxu0
    %v429 = vadd.f32 %v147, %v428
    %430 = vmatprep.mubr.bf16.mxu0 %v363
    %431 = vmatmul.mubr.bf16.gmra.mrb[0].mxu0 %v84
    %v432 = vpop.f32.mrb[0].mxu0
    %v433 = vadd.f32 %v143, %v432
    %v434 = vpop.f32.mrb[0].mxu0
    %v435 = vadd.f32 %v147, %v434
    %v436 = vpop.f32.mrb[0].mxu0
    %v437 = vadd.f32 %v143, %v436
    %v438 = vpop.f32.mrb[0].mxu0
    %v439 = vadd.f32 %v147, %v438
    %440 = vmatprep.mubr.bf16.mxu0 %v366
    %441 = vmatmul.mubr.bf16.gmra.mrb[0].mxu0 %v86
    %v442 = vpop.f32.mrb[0].mxu0
    %v443 = vadd.f32 %v143, %v442
    %v444 = vpop.f32.mrb[0].mxu0
    %v445 = vadd.f32 %v147, %v444
    %v446 = vpop.f32.mrb[0].mxu0
    %v447 = vadd.f32 %v143, %v446
    %v448 = vpop.f32.mrb[0].mxu0
    %v449 = vadd.f32 %v147, %v448
    %450 = vdwg.mxu0
    %451 = vmatprep.subr.bf16.mxu0 0
    %452 = vmatpush1.bf16.msra.mxu0 %v282
    %453 = vmatprep.subr.bf16.mxu0 0
    %454 = vmatpush1.bf16.msra.mxu0 %v285
    %455 = vmatprep.subr.bf16.mxu0 0
    %456 = vmatpush1.bf16.msra.mxu0 %v288
    %457 = vmatprep.subr.bf16.mxu0 0
    %458 = vmatpush1.bf16.msra.mxu0 %v291
    %459 = vmatprep.subr.bf16.mxu0 0
    %460 = vmatpush1.bf16.msra.mxu0 %v294
    %461 = vmatprep.subr.bf16.mxu0 0
    %462 = vmatpush1.bf16.msra.mxu0 %v297
    %463 = vmatprep.subr.bf16.mxu0 0
    %464 = vmatpush1.bf16.msra.mxu0 %v300
    %465 = vmatprep.subr.bf16.mxu0 0
    %466 = vmatpush1.bf16.msra.mxu0 %v303
    %467 = vmatprep.subr.bf16.mxu0 0
    %468 = vmatpush1.bf16.msra.mxu0 %v306
    %469 = vmatprep.subr.bf16.mxu0 0
    %470 = vmatpush1.bf16.msra.mxu0 %v309
    %471 = vmatprep.subr.bf16.mxu0 0
    %472 = vmatpush1.bf16.msra.mxu0 %v312
    %473 = vmatprep.subr.bf16.mxu0 0
    %474 = vmatpush1.bf16.msra.mxu0 %v315
    %475 = vmatprep.subr.bf16.mxu0 0
    %476 = vmatpush1.bf16.msra.mxu0 %v376
    %477 = vmatprep.subr.bf16.mxu0 0
    %478 = vmatpush1.bf16.msra.mxu0 0
    %479 = vmatprep.subr.bf16.mxu0 0
    %480 = vmatpush1.bf16.msra.mxu0 0
    %481 = vmatprep.subr.bf16.mxu0 0
    %482 = vmatpush1.bf16.msra.mxu0 0
    %483 = vmatprep.mubr.bf16.mxu0 %v357
    %484 = vmatmul.mubr.bf16.gmra.mrb[0].mxu0 %v80
    %v485 = vpop.f32.mrb[0].mxu0
    %v486 = vadd.f32 %v151, %v485
    %v487 = vpop.f32.mrb[0].mxu0
    %v488 = vpop.f32.mrb[0].mxu0
    %v489 = vadd.f32 %v151, %v488
    %v490 = vpop.f32.mrb[0].mxu0
    %491 = vmatprep.mubr.bf16.mxu0 %v360
    %492 = vmatmul.mubr.bf16.gmra.mrb[0].mxu0 %v82
    %v493 = vpop.f32.mrb[0].mxu0
    %v494 = vadd.f32 %v151, %v493
    %v495 = vpop.f32.mrb[0].mxu0
    %v496 = vpop.f32.mrb[0].mxu0
    %v497 = vadd.f32 %v151, %v496
    %v498 = vpop.f32.mrb[0].mxu0
    %499 = vmatprep.mubr.bf16.mxu0 %v363
    %500 = vmatmul.mubr.bf16.gmra.mrb[0].mxu0 %v84
    %v501 = vpop.f32.mrb[0].mxu0
    %v502 = vadd.f32 %v151, %v501
    %v503 = vpop.f32.mrb[0].mxu0
    %v504 = vpop.f32.mrb[0].mxu0
    %v505 = vadd.f32 %v151, %v504
    %v506 = vpop.f32.mrb[0].mxu0
    %507 = vmatprep.mubr.bf16.mxu0 %v366
    %508 = vmatmul.mubr.bf16.gmra.mrb[0].mxu0 %v86
    %v509 = vpop.f32.mrb[0].mxu0
    %v510 = vadd.f32 %v151, %v509
    %v511 = vpop.f32.mrb[0].mxu0
    %v512 = vpop.f32.mrb[0].mxu0
    %v513 = vadd.f32 %v151, %v512
    %v514 = vpop.f32.mrb[0].mxu0
    %515 = vdwg.mxu0
    %v516 = vmax.f32 %v413, 0.0
    %v517 = vmax.f32 %v415, 0.0
    %v518 = vmax.f32 %v486, 0.0
    %v519 = vmax.f32 %v417, 0.0
    %v520 = vmax.f32 %v419, 0.0
    %v521 = vmax.f32 %v489, 0.0
    %v522 = vmax.f32 %v423, 0.0
    %v523 = vmax.f32 %v425, 0.0
    %v524 = vmax.f32 %v494, 0.0
    %v525 = vmax.f32 %v427, 0.0
    %v526 = vmax.f32 %v429, 0.0
    %v527 = vmax.f32 %v497, 0.0
    %v528 = vmax.f32 %v433, 0.0
    %v529 = vmax.f32 %v435, 0.0
    %v530 = vmax.f32 %v502, 0.0
    %v531 = vmax.f32 %v437, 0.0
    %v532 = vmax.f32 %v439, 0.0
    %v533 = vmax.f32 %v505, 0.0
    %v534 = vmax.f32 %v443, 0.0
    %v535 = vmax.f32 %v445, 0.0
    %v536 = vmax.f32 %v510, 0.0
    %v537 = vmax.f32 %v447, 0.0
    %v538 = vmax.f32 %v449, 0.0
    %v539 = vmax.f32 %v513, 0.0
    %v540 = vpack.c.bf16 %v519, %v516
    %v541 = vpack.c.bf16 %v520, %v517
    %v542 = vpack.c.bf16 %v521, %v518
    %v543 = vpack.c.bf16 %v525, %v522
    %v544 = vpack.c.bf16 %v526, %v523
    %v545 = vpack.c.bf16 %v527, %v524
    %v546 = vpack.c.bf16 %v531, %v528
    %v547 = vpack.c.bf16 %v532, %v529
    %v548 = vpack.c.bf16 %v533, %v530
    %v549 = vpack.c.bf16 %v537, %v534
    %v550 = vpack.c.bf16 %v538, %v535
    %v551 = vpack.c.bf16 %v539, %v536
    %v552 = vld [vmem:[%s3] sm:$0xf]
    %v553 = vld [vmem:[%s3 + $0x4] sm:$0xf]
    %v554 = vld [vmem:[%s3 + $0x8] sm:$0xf]
    %v555 = vld [vmem:[%s3 + $0xc] sm:$0xf]
    %v556 = vld [vmem:[%s3 + $0x10] sm:$0xf]
    %v557 = vld [vmem:[%s3 + $0x14] sm:$0xf]
    %v558 = vld [vmem:[%s3 + $0x18] sm:$0xf]
    %v559 = vld [vmem:[%s3 + $0x1c] sm:$0xf]
    %v560 = vld [vmem:[%s3 + $0x20] sm:$0xf]
    %v561 = vld [vmem:[%s3 + $0x24] sm:$0xf]
    %v562 = vld [vmem:[%s3 + $0x28] sm:$0xf]
    %v563 = vld [vmem:[%s3 + $0x2c] sm:$0xf]
    %v564 = vld [vmem:[%s3 + $0x30] sm:$0xf]
    %v565 = vld [vmem:[%s3 + $0x34] sm:$0xf]
    %v566 = vld [vmem:[%s3 + $0x38] sm:$0xf]
    %v567 = vld [vmem:[%s3 + $0x3c] sm:$0xf]
    %v568 = vld [vmem:[%s3 + $0x40] sm:$0xf]
    %v569 = vld [vmem:[%s3 + $0x44] sm:$0xf]
    %v570 = vld [vmem:[%s3 + $0x48] sm:$0xf]
    %v571 = vld [vmem:[%s3 + $0x4c] sm:$0xf]
    %v572 = vld [vmem:[%s3 + $0x50] sm:$0xf]
    %v573 = vld [vmem:[%s3 + $0x54] sm:$0xf]
    %v574 = vld [vmem:[%s3 + $0x58] sm:$0xf]
    %v575 = vld [vmem:[%s3 + $0x5c] sm:$0xf]
    %v576 = vld [vmem:[%s3 + $0x60] sm:$0xf]
    %v577 = vld [vmem:[%s3 + $0x64] sm:$0xf]
    %v578 = vld [vmem:[%s3 + $0x68] sm:$0xf]
    %v579 = vld [vmem:[%s3 + $0x6c] sm:$0xf]
    %v580 = vld [vmem:[%s3 + $0x70] sm:$0xf]
    %v581 = vld [vmem:[%s3 + $0x74] sm:$0xf]
    %v582 = vld [vmem:[%s3 + $0x78] sm:$0xf]
    %v583 = vld [vmem:[%s3 + $0x7c] sm:$0xf]
    %v584 = vld [vmem:[%s3 + $0x80] sm:$0xf]
    %v585 = vld [vmem:[%s3 + $0x84] sm:$0xf]
    %v586 = vld [vmem:[%s3 + $0x88] sm:$0xf]
    %v587 = vld [vmem:[%s3 + $0x8c] sm:$0xf]
    %v588 = vld [vmem:[%s3 + $0x90] sm:$0xf]
    %v589 = vld [vmem:[%s3 + $0x94] sm:$0xf]
    %v590 = vld [vmem:[%s3 + $0x98] sm:$0xf]
    %v591 = vld [vmem:[%s3 + $0x9c] sm:$0xf]
    %v592 = vld [vmem:[%s3 + $0xa0] sm:$0xf]
    %v593 = vld [vmem:[%s3 + $0xa4] sm:$0xf]
    %v594 = vld [vmem:[%s3 + $0xa8] sm:$0xf]
    %v595 = vld [vmem:[%s3 + $0xac] sm:$0xf]
    %v596 = vld [vmem:[%s3 + $0xb0] sm:$0xf]
    %v597 = vld [vmem:[%s3 + $0xb4] sm:$0xf]
    %v598 = vld [vmem:[%s3 + $0xb8] sm:$0xf]
    %v599 = vld [vmem:[%s3 + $0xbc] sm:$0xf]
    %v600 = vld [vmem:[#allocation4] sm:$0x1]
    %v602 = vlaneseq
    %v603 = vshrl.u32 %v602, 7
    %v604 = vsub.s32 0, %v603
    %v605 = vrot.slane %v600, %v604
    %v655 = vunpack.c.l.b16 %v552
    %v656 = vunpack.c.l.b16 %v553
    %v657 = vunpack.c.l.b16 %v554
    %v658 = vunpack.c.l.b16 %v555
    %v659 = vunpack.c.l.b16 %v556
    %v660 = vunpack.c.l.b16 %v557
    %v661 = vunpack.c.l.b16 %v558
    %v662 = vunpack.c.l.b16 %v559
    %v663 = vunpack.c.l.b16 %v560
    %v664 = vunpack.c.l.b16 %v561
    %v665 = vunpack.c.l.b16 %v562
    %v666 = vunpack.c.l.b16 %v563
    %v667 = vunpack.c.l.b16 %v564
    %v668 = vunpack.c.l.b16 %v565
    %v669 = vunpack.c.l.b16 %v566
    %v670 = vunpack.c.l.b16 %v567
    %v671 = vunpack.c.l.b16 %v568
    %v672 = vunpack.c.l.b16 %v569
    %v673 = vunpack.c.l.b16 %v570
    %v674 = vunpack.c.l.b16 %v571
    %v675 = vunpack.c.l.b16 %v572
    %v676 = vunpack.c.l.b16 %v573
    %v677 = vunpack.c.l.b16 %v574
    %v678 = vunpack.c.l.b16 %v575
    %v679 = vunpack.c.l.b16 %v576
    %v680 = vunpack.c.l.b16 %v577
    %v681 = vunpack.c.l.b16 %v578
    %v682 = vunpack.c.l.b16 %v579
    %v683 = vunpack.c.l.b16 %v580
    %v684 = vunpack.c.l.b16 %v581
    %v685 = vunpack.c.l.b16 %v582
    %v686 = vunpack.c.l.b16 %v583
    %v687 = vunpack.c.l.b16 %v584
    %v688 = vunpack.c.l.b16 %v585
    %v689 = vunpack.c.l.b16 %v586
    %v690 = vunpack.c.l.b16 %v587
    %v691 = vunpack.c.l.b16 %v588
    %v692 = vunpack.c.l.b16 %v589
    %v693 = vunpack.c.l.b16 %v590
    %v694 = vunpack.c.l.b16 %v591
    %v695 = vunpack.c.l.b16 %v592
    %v696 = vunpack.c.l.b16 %v593
    %v697 = vunpack.c.l.b16 %v594
    %v698 = vunpack.c.l.b16 %v595
    %v699 = vunpack.c.l.b16 %v596
    %v700 = vunpack.c.l.b16 %v597
    %v701 = vunpack.c.l.b16 %v598
    %v702 = vunpack.c.l.b16 %v599
    %v703 = vpack.c.b16 %v656, %v655
    %v704 = vpack.c.b16 %v658, %v657
    %v705 = vpack.c.b16 %v660, %v659
    %v706 = vpack.c.b16 %v662, %v661
    %v707 = vpack.c.b16 %v664, %v663
    %v708 = vpack.c.b16 %v666, %v665
    %v709 = vpack.c.b16 %v668, %v667
    %v710 = vpack.c.b16 %v670, %v669
    %v711 = vpack.c.b16 %v672, %v671
    %v712 = vpack.c.b16 %v674, %v673
    %v713 = vpack.c.b16 %v676, %v675
    %v714 = vpack.c.b16 %v678, %v677
    %v715 = vpack.c.b16 %v680, %v679
    %v716 = vpack.c.b16 %v682, %v681
    %v717 = vpack.c.b16 %v684, %v683
    %v718 = vpack.c.b16 %v686, %v685
    %v719 = vpack.c.b16 %v688, %v687
    %v720 = vpack.c.b16 %v690, %v689
    %v721 = vpack.c.b16 %v692, %v691
    %v722 = vpack.c.b16 %v694, %v693
    %v723 = vpack.c.b16 %v696, %v695
    %v724 = vpack.c.b16 %v698, %v697
    %v725 = vpack.c.b16 %v700, %v699
    %v726 = vpack.c.b16 %v702, %v701
    %751 = vmatprep.subr.bf16.mxu0 0
    %752 = vmatpush1.bf16.msra.mxu0 %v703
    %753 = vmatprep.subr.bf16.mxu0 0
    %754 = vmatpush1.bf16.msra.mxu0 %v704
    %755 = vmatprep.subr.bf16.mxu0 0
    %756 = vmatpush1.bf16.msra.mxu0 %v705
    %757 = vmatprep.subr.bf16.mxu0 0
    %758 = vmatpush1.bf16.msra.mxu0 %v706
    %759 = vmatprep.subr.bf16.mxu0 0
    %760 = vmatpush1.bf16.msra.mxu0 %v707
    %761 = vmatprep.subr.bf16.mxu0 0
    %762 = vmatpush1.bf16.msra.mxu0 %v708
    %763 = vmatprep.subr.bf16.mxu0 0
    %764 = vmatpush1.bf16.msra.mxu0 %v709
    %765 = vmatprep.subr.bf16.mxu0 0
    %766 = vmatpush1.bf16.msra.mxu0 %v710
    %767 = vmatprep.subr.bf16.mxu0 0
    %768 = vmatpush1.bf16.msra.mxu0 %v711
    %769 = vmatprep.subr.bf16.mxu0 0
    %770 = vmatpush1.bf16.msra.mxu0 %v712
    %771 = vmatprep.subr.bf16.mxu0 0
    %772 = vmatpush1.bf16.msra.mxu0 %v713
    %773 = vmatprep.subr.bf16.mxu0 0
    %774 = vmatpush1.bf16.msra.mxu0 %v714
    %775 = vmatprep.subr.bf16.mxu0 0
    %776 = vmatpush1.bf16.msra.mxu0 %v715
    %777 = vmatprep.subr.bf16.mxu0 0
    %778 = vmatpush1.bf16.msra.mxu0 %v716
    %779 = vmatprep.subr.bf16.mxu0 0
    %780 = vmatpush1.bf16.msra.mxu0 %v717
    %781 = vmatprep.subr.bf16.mxu0 0
    %782 = vmatpush1.bf16.msra.mxu0 %v718
    %783 = vmatprep.mubr.bf16.mxu0 %v541
    %784 = vmatmul.mubr.bf16.gmra.mrb[0].mxu0 %v540
    %v785 = vpop.f32.mrb[0].mxu0
    %v786 = vadd.f32 %v605, %v785
    %v787 = vpop.f32.mrb[0].mxu0
    %v788 = vpop.f32.mrb[0].mxu0
    %v789 = vadd.f32 %v605, %v788
    %v790 = vpop.f32.mrb[0].mxu0
    %791 = vmatprep.mubr.bf16.mxu0 %v544
    %792 = vmatmul.mubr.bf16.gmra.mrb[0].mxu0 %v543
    %v793 = vpop.f32.mrb[0].mxu0
    %v794 = vadd.f32 %v605, %v793
    %v795 = vpop.f32.mrb[0].mxu0
    %v796 = vpop.f32.mrb[0].mxu0
    %v797 = vadd.f32 %v605, %v796
    %v798 = vpop.f32.mrb[0].mxu0
    %799 = vmatprep.mubr.bf16.mxu0 %v547
    %800 = vmatmul.mubr.bf16.gmra.mrb[0].mxu0 %v546
    %v801 = vpop.f32.mrb[0].mxu0
    %v802 = vadd.f32 %v605, %v801
    %v803 = vpop.f32.mrb[0].mxu0
    %v804 = vpop.f32.mrb[0].mxu0
    %v805 = vadd.f32 %v605, %v804
    %v806 = vpop.f32.mrb[0].mxu0
    %807 = vmatprep.mubr.bf16.mxu0 %v550
    %808 = vmatmul.mubr.bf16.gmra.mrb[0].mxu0 %v549
    %v809 = vpop.f32.mrb[0].mxu0
    %v810 = vadd.f32 %v605, %v809
    %v811 = vpop.f32.mrb[0].mxu0
    %v812 = vpop.f32.mrb[0].mxu0
    %v813 = vadd.f32 %v605, %v812
    %v814 = vpop.f32.mrb[0].mxu0
    %815 = vdwg.mxu0
    %816 = vmatprep.subr.bf16.mxu0 0
    %817 = vmatpush1.bf16.msra.mxu0 %v719
    %818 = vmatprep.subr.bf16.mxu0 0
    %819 = vmatpush1.bf16.msra.mxu0 %v720
    %820 = vmatprep.subr.bf16.mxu0 0
    %821 = vmatpush1.bf16.msra.mxu0 %v721
    %822 = vmatprep.subr.bf16.mxu0 0
    %823 = vmatpush1.bf16.msra.mxu0 %v722
    %824 = vmatprep.subr.bf16.mxu0 0
    %825 = vmatpush1.bf16.msra.mxu0 %v723
    %826 = vmatprep.subr.bf16.mxu0 0
    %827 = vmatpush1.bf16.msra.mxu0 %v724
    %828 = vmatprep.subr.bf16.mxu0 0
    %829 = vmatpush1.bf16.msra.mxu0 %v725
    %830 = vmatprep.subr.bf16.mxu0 0
    %831 = vmatpush1.bf16.msra.mxu0 %v726
    %832 = vmatprep.subr.bf16.mxu0 0
    %833 = vmatpush1.bf16.msra.mxu0 0
    %834 = vmatprep.subr.bf16.mxu0 0
    %835 = vmatpush1.bf16.msra.mxu0 0
    %836 = vmatprep.subr.bf16.mxu0 0
    %837 = vmatpush1.bf16.msra.mxu0 0
    %838 = vmatprep.subr.bf16.mxu0 0
    %839 = vmatpush1.bf16.msra.mxu0 0
    %840 = vmatprep.subr.bf16.mxu0 0
    %841 = vmatpush1.bf16.msra.mxu0 0
    %842 = vmatprep.subr.bf16.mxu0 0
    %843 = vmatpush1.bf16.msra.mxu0 0
    %844 = vmatprep.subr.bf16.mxu0 0
    %845 = vmatpush1.bf16.msra.mxu0 0
    %846 = vmatprep.subr.bf16.mxu0 0
    %847 = vmatpush1.bf16.msra.mxu0 0
    %848 = vmatprep.mubr.bf16.mxu0 0
    %849 = vmatmul.mubr.bf16.gmra.mrb[0].mxu0 %v542
    %v850 = vpop.f32.mrb[0].mxu0
    %v851 = vadd.f32 %v786, %v850
    %v852 = vpop.f32.mrb[0].mxu0
    %v853 = vpop.f32.mrb[0].mxu0
    %v854 = vadd.f32 %v789, %v853
    %v855 = vpop.f32.mrb[0].mxu0
    %856 = vmatprep.mubr.bf16.mxu0 0
    %857 = vmatmul.mubr.bf16.gmra.mrb[0].mxu0 %v545
    %v858 = vpop.f32.mrb[0].mxu0
    %v859 = vadd.f32 %v794, %v858
    %v860 = vpop.f32.mrb[0].mxu0
    %v861 = vpop.f32.mrb[0].mxu0
    %v862 = vadd.f32 %v797, %v861
    %v863 = vpop.f32.mrb[0].mxu0
    %864 = vmatprep.mubr.bf16.mxu0 0
    %865 = vmatmul.mubr.bf16.gmra.mrb[0].mxu0 %v548
    %v866 = vpop.f32.mrb[0].mxu0
    %v867 = vadd.f32 %v802, %v866
    %v868 = vpop.f32.mrb[0].mxu0
    %v869 = vpop.f32.mrb[0].mxu0
    %v870 = vadd.f32 %v805, %v869
    %v871 = vpop.f32.mrb[0].mxu0
    %872 = vmatprep.mubr.bf16.mxu0 0
    %873 = vmatmul.mubr.bf16.gmra.mrb[0].mxu0 %v551
    %v874 = vpop.f32.mrb[0].mxu0
    %v875 = vadd.f32 %v810, %v874
    %v876 = vpop.f32.mrb[0].mxu0
    %v877 = vpop.f32.mrb[0].mxu0
    %v878 = vadd.f32 %v813, %v877
    %v879 = vpop.f32.mrb[0].mxu0
    %880 = vdwg.mxu0
    %v881 = vmax.f32 %v851, 0.0
    %v882 = vmax.f32 %v854, 0.0
    %v883 = vmax.f32 %v859, 0.0
    %v884 = vmax.f32 %v862, 0.0
    %v885 = vmax.f32 %v867, 0.0
    %v886 = vmax.f32 %v870, 0.0
    %v887 = vmax.f32 %v875, 0.0
    %v888 = vmax.f32 %v878, 0.0
    %v889 = vpack.c.bf16 %v882, %v881
    %v890 = vpack.c.bf16 %v884, %v883
    %v891 = vpack.c.bf16 %v886, %v885
    %v892 = vpack.c.bf16 %v888, %v887
    %v893 = vld [vmem:[%s5] sm:$0xf]
    %v894 = vld [vmem:[%s5 + $0x4] sm:$0xf]
    %v895 = vld [vmem:[%s5 + $0x8] sm:$0xf]
    %v896 = vld [vmem:[%s5 + $0xc] sm:$0xf]
    %v897 = vld [vmem:[%s5 + $0x10] sm:$0xf]
    %v898 = vld [vmem:[%s5 + $0x14] sm:$0xf]
    %v899 = vld [vmem:[%s5 + $0x18] sm:$0xf]
    %v900 = vld [vmem:[%s5 + $0x1c] sm:$0xf]
    %v901 = vld [vmem:[%s5 + $0x20] sm:$0xf]
    %v902 = vld [vmem:[%s5 + $0x24] sm:$0xf]
    %v903 = vld [vmem:[%s5 + $0x28] sm:$0xf]
    %v904 = vld [vmem:[%s5 + $0x2c] sm:$0xf]
    %v905 = vld [vmem:[%s5 + $0x30] sm:$0xf]
    %v906 = vld [vmem:[%s5 + $0x34] sm:$0xf]
    %v907 = vld [vmem:[%s5 + $0x38] sm:$0xf]
    %v908 = vld [vmem:[%s5 + $0x3c] sm:$0xf]
    %v909 = vld [vmem:[#allocation6] sm:$0x1]
    %v911 = vlaneseq
    %v912 = vshrl.u32 %v911, 7
    %v913 = vsub.s32 0, %v912
    %v914 = vrot.slane %v909, %v913
    %v932 = vunpack.c.l.b16 %v893
    %v933 = vunpack.c.l.b16 %v894
    %v934 = vunpack.c.l.b16 %v895
    %v935 = vunpack.c.l.b16 %v896
    %v936 = vunpack.c.l.b16 %v897
    %v937 = vunpack.c.l.b16 %v898
    %v938 = vunpack.c.l.b16 %v899
    %v939 = vunpack.c.l.b16 %v900
    %v940 = vunpack.c.l.b16 %v901
    %v941 = vunpack.c.l.b16 %v902
    %v942 = vunpack.c.l.b16 %v903
    %v943 = vunpack.c.l.b16 %v904
    %v944 = vunpack.c.l.b16 %v905
    %v945 = vunpack.c.l.b16 %v906
    %v946 = vunpack.c.l.b16 %v907
    %v947 = vunpack.c.l.b16 %v908
    %v948 = vpack.c.b16 %v933, %v932
    %v949 = vpack.c.b16 %v935, %v934
    %v950 = vpack.c.b16 %v937, %v936
    %v951 = vpack.c.b16 %v939, %v938
    %v952 = vpack.c.b16 %v941, %v940
    %v953 = vpack.c.b16 %v943, %v942
    %v954 = vpack.c.b16 %v945, %v944
    %v955 = vpack.c.b16 %v947, %v946
    %964 = vmatprep.subr.bf16.mxu0 0
    %965 = vmatpush1.bf16.msra.mxu0 %v948
    %966 = vmatprep.subr.bf16.mxu0 0
    %967 = vmatpush1.bf16.msra.mxu0 %v949
    %968 = vmatprep.subr.bf16.mxu0 0
    %969 = vmatpush1.bf16.msra.mxu0 %v950
    %970 = vmatprep.subr.bf16.mxu0 0
    %971 = vmatpush1.bf16.msra.mxu0 %v951
    %972 = vmatprep.subr.bf16.mxu0 0
    %973 = vmatpush1.bf16.msra.mxu0 %v952
    %974 = vmatprep.subr.bf16.mxu0 0
    %975 = vmatpush1.bf16.msra.mxu0 %v953
    %976 = vmatprep.subr.bf16.mxu0 0
    %977 = vmatpush1.bf16.msra.mxu0 %v954
    %978 = vmatprep.subr.bf16.mxu0 0
    %979 = vmatpush1.bf16.msra.mxu0 %v955
    %980 = vmatprep.subr.bf16.mxu0 0
    %981 = vmatpush1.bf16.msra.mxu0 0
    %982 = vmatprep.subr.bf16.mxu0 0
    %983 = vmatpush1.bf16.msra.mxu0 0
    %984 = vmatprep.subr.bf16.mxu0 0
    %985 = vmatpush1.bf16.msra.mxu0 0
    %986 = vmatprep.subr.bf16.mxu0 0
    %987 = vmatpush1.bf16.msra.mxu0 0
    %988 = vmatprep.subr.bf16.mxu0 0
    %989 = vmatpush1.bf16.msra.mxu0 0
    %990 = vmatprep.subr.bf16.mxu0 0
    %991 = vmatpush1.bf16.msra.mxu0 0
    %992 = vmatprep.subr.bf16.mxu0 0
    %993 = vmatpush1.bf16.msra.mxu0 0
    %994 = vmatprep.subr.bf16.mxu0 0
    %995 = vmatpush1.bf16.msra.mxu0 0
    %996 = vmatprep.mubr.bf16.mxu0 0
    %997 = vmatmul.mubr.bf16.gmra.mrb[0].mxu0 %v889
    %v998 = vpop.f32.mrb[0].mxu0
    %v999 = vadd.f32 %v914, %v998
    %v1000 = vpop.f32.mrb[0].mxu0
    %v1001 = vpop.f32.mrb[0].mxu0
    %v1002 = vadd.f32 %v914, %v1001
    %v1003 = vpop.f32.mrb[0].mxu0
    %1004 = vmatprep.mubr.bf16.mxu0 0
    %1005 = vmatmul.mubr.bf16.gmra.mrb[0].mxu0 %v890
    %v1006 = vpop.f32.mrb[0].mxu0
    %v1007 = vadd.f32 %v914, %v1006
    %v1008 = vpop.f32.mrb[0].mxu0
    %v1009 = vpop.f32.mrb[0].mxu0
    %v1010 = vadd.f32 %v914, %v1009
    %v1011 = vpop.f32.mrb[0].mxu0
    %1012 = vmatprep.mubr.bf16.mxu0 0
    %1013 = vmatmul.mubr.bf16.gmra.mrb[0].mxu0 %v891
    %v1014 = vpop.f32.mrb[0].mxu0
    %v1015 = vadd.f32 %v914, %v1014
    %v1016 = vpop.f32.mrb[0].mxu0
    %v1017 = vpop.f32.mrb[0].mxu0
    %v1018 = vadd.f32 %v914, %v1017
    %v1019 = vpop.f32.mrb[0].mxu0
    %1020 = vmatprep.mubr.bf16.mxu0 0
    %1021 = vmatmul.mubr.bf16.gmra.mrb[0].mxu0 %v892
    %v1022 = vpop.f32.mrb[0].mxu0
    %v1023 = vadd.f32 %v914, %v1022
    %v1024 = vpop.f32.mrb[0].mxu0
    %v1025 = vpop.f32.mrb[0].mxu0
    %v1026 = vadd.f32 %v914, %v1025
    %v1027 = vpop.f32.mrb[0].mxu0
    %1028 = vdwg.mxu0
    %v1029 = vpack.c.bf16 %v1002, %v999
    %v1030 = vpack.c.bf16 %v1010, %v1007
    %v1031 = vpack.c.bf16 %v1018, %v1015
    %v1032 = vpack.c.bf16 %v1026, %v1023
    %v1037 = vunpack.c.l.b16 %v1029
    %v1038 = vunpack.c.h.b16 %v1029
    %v1039 = vunpack.c.l.b16 %v1030
    %v1040 = vunpack.c.h.b16 %v1030
    %v1041 = vunpack.c.l.b16 %v1031
    %v1042 = vunpack.c.h.b16 %v1031
    %v1043 = vunpack.c.l.b16 %v1032
    %v1044 = vunpack.c.h.b16 %v1032
    %v1045 = vpack.c.b16 %v1037, %v1037
    %v1046 = vpack.c.b16 %v1038, %v1038
    %v1047 = vpack.c.b16 %v1039, %v1039
    %v1048 = vpack.c.b16 %v1040, %v1040
    %v1049 = vpack.c.b16 %v1041, %v1041
    %v1050 = vpack.c.b16 %v1042, %v1042
    %v1051 = vpack.c.b16 %v1043, %v1043
    %v1052 = vpack.c.b16 %v1044, %v1044
    %1061 = vst [vmem:[%s7] sm:$0xf] %v1045
    %1062 = vst [vmem:[%s7 + $0x4] sm:$0xf] %v1046
    %1063 = vst [vmem:[%s7 + $0x8] sm:$0xf] %v1047
    %1064 = vst [vmem:[%s7 + $0xc] sm:$0xf] %v1048
    %1065 = vst [vmem:[%s7 + $0x10] sm:$0xf] %v1049
    %1066 = vst [vmem:[%s7 + $0x14] sm:$0xf] %v1050
    %1067 = vst [vmem:[%s7 + $0x18] sm:$0xf] %v1051
    %1068 = vst [vmem:[%s7 + $0x1c] sm:$0xf] %v1052
    // Predicated region
    $region42: #{net_forward.1} parent=1 // pred_check
      _
    $region43: #{net_forward.1} parent=1 // pred_check_branch
      %1070 = sbr.rel (0) target = $region45
    $region44: #{net_forward.1} parent=1 // pred_region
      _
    $region45: #{net_forward.1} parent=1 // pred_fallthru
      _
    // Predicated region
    $region46: #{net_forward.1} parent=1 // pred_check
      _
    $region47: #{net_forward.1} parent=1 // pred_check_branch
      %1072 = sbr.rel (0) target = $region49
    $region48: #{net_forward.1} parent=1 // pred_region
      _
    $region49: #{net_forward.1} parent=1 // pred_fallthru
      _
    %1073 = vsyncpa [#allocation3], 1
    %1074 = vsyncpa [#allocation5], 1

</llo_original>
